<compile_context>
chip_gen: v7x
topology: tpu7x:2x2x1
jax: 0.10.0
libtpu: 0.0.40
codegen_flags: <defaults>
</compile_context>

<pallas_src>
import math
import functools

import jax
import jax.numpy as jnp
from jax.experimental import pallas as pl
from jax.experimental.pallas import tpu as pltpu


def build_pe_table(d_model: int, max_len: int = 5000) -> jnp.ndarray:
    """Deterministic sinusoidal positional-encoding table, shape (max_len, d_model)."""
    position = jnp.arange(0, max_len, dtype=jnp.float32)[:, None]          # (max_len, 1)
    div_term = jnp.exp(
        jnp.arange(0, d_model, 2, dtype=jnp.float32) * (-math.log(10000.0) / d_model)
    )                                                                       # (d_model//2,)
    ang = position * div_term                                               # (max_len, d_model//2)
    pe = jnp.zeros((max_len, d_model), dtype=jnp.float32)
    pe = pe.at[:, 0::2].set(jnp.sin(ang))
    pe = pe.at[:, 1::2].set(jnp.cos(ang))
    return pe


# ---------------- kernels ----------------

def _hash_u32(x):
    """splitmix32-style finalizer on uint32 (wraps mod 2**32). VPU-only ops."""
    x = (x ^ (x >> 16)) * jnp.uint32(0x7FEB352D)
    x = (x ^ (x >> 15)) * jnp.uint32(0x846CA68B)
    x = x ^ (x >> 16)
    return x


def _pe_add_kernel(x_ref, pe_ref, o_ref, *, bt):
    # x_ref/o_ref: (ts, bt*D)   pe_ref: (ts, D)
    pe = pe_ref[...]
    if bt > 1:
        pe = jnp.tile(pe, (1, bt))           # in-VMEM lane replication (no HBM traffic)
    o_ref[...] = (x_ref[...] + pe).astype(o_ref.dtype)


def _pe_add_dropout_kernel(x_ref, pe_ref, o_ref, *, bt, p, seed_mix, total_cols):
    # Training-mode inverted dropout; mask from a counter-based hash of the
    # global element index so results are independent of the chosen tiling.
    pe = pe_ref[...]
    if bt > 1:
        pe = jnp.tile(pe, (1, bt))
    y = x_ref[...] + pe

    ts, cols = y.shape
    row = jax.lax.broadcasted_iota(jnp.int32, y.shape, 0) + pl.program_id(0) * ts
    col = jax.lax.broadcasted_iota(jnp.int32, y.shape, 1) + pl.program_id(1) * cols
    idx = (row * total_cols + col).astype(jnp.uint32)
    bits = _hash_u32(idx ^ jnp.uint32(seed_mix))

    thr = min(int(round(p * 4294967296.0)), 4294967295)   # clamp (avoid 2**32 wrap)
    keep = bits >= jnp.uint32(thr)                         # P(keep) ~= 1 - p
    scale = jnp.asarray(1.0 / (1.0 - p), dtype=y.dtype)
    o_ref[...] = jnp.where(keep, y * scale, jnp.zeros_like(y)).astype(o_ref.dtype)


# ---------------- tiling helpers ----------------

def _vmem_budget():
    """(vmem_limit_bytes, tile_budget_bytes) derived from this chip's VMEM."""
    try:
        cap = pltpu.get_tpu_info().vmem_capacity_bytes   # 128 MiB v5e/v6e, 64 MiB v7x
    except Exception:
        cap = 64 * 1024 * 1024                           # conservative fallback
    vmem_limit = min(cap // 2, 64 * 1024 * 1024)
    budget = int(vmem_limit * 0.75)                      # ~25% headroom for the pipeline
    return vmem_limit, budget


def _choose_tiles(S, B, D, itemsize, budget, ts_cap=1024):
    """Pick (ts, bt): seq-tile rows and batches per column tile for the (S, B*D) layout."""
    def working_set(ts, bt):
        xo = 2 * 2 * ts * bt * D * itemsize   # x block + out block, double-buffered
        pe = 2 * ts * D * itemsize            # pe block, double-buffered
        return xo + pe

    min_ts = S if S < 8 else 8

    # Batch tile: full B unless even the minimal seq tile blows the budget; if we
    # must shrink, keep the column block lane-dense ((bt*D) % 128 == 0).
    bt = B
    if working_set(min_ts, B) > budget:
        cands = [c for c in range(B - 1, 0, -1)
                 if B % c == 0 and (c * D) % 128 == 0]
        fitting = [c for c in cands if working_set(min_ts, c) <= budget]
        if fitting:
            bt = fitting[0]       # largest lane-dense batch tile that fits
        elif cands:
            bt = cands[-1]        # best effort; vmem_limit is raised explicitly anyway

    # Seq tile: largest multiple of 8 (capped) that fits; S itself when S <= 8.
    if S <= 8:
        return S, bt
    ts = min(S, ts_cap)
    if ts < S:
        ts -= ts % 8
    while ts > 8 and working_set(ts, bt) > budget:
        nxt = max(8, (ts // 2) - ((ts // 2) % 8))
        if nxt == ts:
            break
        ts = nxt
    return ts, bt


# ---------------- wrapper ----------------

def positional_encoding_forward(x, pe_table, *, p=0.1, training=False, seed=0):
    """x: (S, B, D). pe_table: (max_len, D). Returns (S, B, D) = dropout(x + pe[:S])."""
    S, B, D = x.shape
    assert pe_table.shape[0] >= S and pe_table.shape[1] == D

    # Lane-dense layout: (S, B*D). Pure layout plumbing; no compute moved out of kernel.
    x2 = x.reshape(S, B * D)
    pe2 = pe_table[:S, :].astype(x.dtype)                 # (S, D), un-expanded

    itemsize = jnp.dtype(x.dtype).itemsize
    vmem_limit, budget = _vmem_budget()
    ts, bt = _choose_tiles(S, B, D, itemsize, budget)

    grid = (pl.cdiv(S, ts), pl.cdiv(B, bt))
    out_shape = jax.ShapeDtypeStruct((S, B * D), x.dtype)
    compiler_params = pltpu.CompilerParams(
        dimension_semantics=("parallel", "parallel"),     # tiles fully independent
        vmem_limit_bytes=vmem_limit,
    )

    in_specs = [
        pl.BlockSpec((ts, bt * D), lambda i, j: (i, j)),
        pl.BlockSpec((ts, D), lambda i, j: (i, 0)),
    ]
    out_specs = pl.BlockSpec((ts, bt * D), lambda i, j: (i, j))

    if training and p > 0.0:
        seed_mix = (int(seed) * 0x9E3779B9) & 0xFFFFFFFF
        kernel = functools.partial(
            _pe_add_dropout_kernel, bt=bt, p=float(p),
            seed_mix=seed_mix, total_cols=B * D,
        )
    else:
        kernel = functools.partial(_pe_add_kernel, bt=bt)

    out2 = pl.pallas_call(
        kernel,
        out_shape=out_shape,
        grid=grid,
        in_specs=in_specs,
        out_specs=out_specs,
        compiler_params=compiler_params,
    )(x2, pe2)

    return out2.reshape(S, B, D)


if __name__ == "__main__":
    # Small shapes consistent with the module: (seq_len, batch, d_model)
    S, B, D = 8, 2, 32
    key = jax.random.PRNGKey(0)
    x = jax.random.normal(key, (S, B, D), dtype=jnp.float32)

    pe_table = build_pe_table(d_model=D, max_len=5000)
    ref = x + pe_table[:S, :][:, None, :]

    # Eval-mode forward (dropout is identity at inference, matching torch .eval()).
    out = positional_encoding_forward(x, pe_table, p=0.1, training=False)
    out = jax.block_until_ready(out)
    assert out.shape == (S, B, D)
    assert jnp.allclose(out, ref, atol=1e-6), "eval-mode mismatch vs reference"

    # Training-mode forward (inverted dropout). Kept elements must equal ref / (1 - p).
    p = 0.1
    out_tr = positional_encoding_forward(x, pe_table, p=p, training=True, seed=123)
    out_tr = jax.block_until_ready(out_tr)
    assert out_tr.shape == (S, B, D)
    kept = out_tr != 0
    assert jnp.allclose(jnp.where(kept, out_tr, 0.0),
                        jnp.where(kept, ref / (1.0 - p), 0.0),
                        atol=1e-5), "training-mode kept elements mismatch"

    print("KERNEL_OK")
</pallas_src>

<mosaic_0001>
module attributes {stable_mosaic.version = 11 : i64} {
  func.func @_pe_add_kernel(%arg0: i32, %arg1: i32, %arg2: memref<8x64xf32, #tpu.memory_space<vmem>>, %arg3: memref<8x32xf32, #tpu.memory_space<vmem>>, %arg4: memref<8x64xf32, #tpu.memory_space<vmem>>) attributes {dimension_semantics = [#tpu.dimension_semantics<parallel>, #tpu.dimension_semantics<parallel>], iteration_bounds = array<i64: 1, 1>, scalar_prefetch = 0 : i64, scratch_operands = 0 : i64, tpu.core_type = #tpu.core_type<tc>, window_params = [{transform_indices = @transform_0, window_bounds = array<i64: 8, 64>}, {transform_indices = @transform_1, window_bounds = array<i64: 8, 32>}, {transform_indices = @transform_2, window_bounds = array<i64: 8, 64>}]} {
    %c0 = arith.constant 0 : index
    %c0_0 = arith.constant 0 : index
    %0 = vector.load %arg3[%c0, %c0_0] : memref<8x32xf32, #tpu.memory_space<vmem>>, vector<8x32xf32>
    %1 = tpu.concatenate %0, %0 in 1 : vector<8x32xf32>, vector<8x32xf32> -> vector<8x64xf32>
    %c0_1 = arith.constant 0 : index
    %c0_2 = arith.constant 0 : index
    %2 = vector.load %arg2[%c0_1, %c0_2] : memref<8x64xf32, #tpu.memory_space<vmem>>, vector<8x64xf32>
    %3 = arith.addf %2, %1 : vector<8x64xf32>
    %c0_3 = arith.constant 0 : index
    %c0_4 = arith.constant 0 : index
    %4 = vector.load %arg4[%c0_3, %c0_4] : memref<8x64xf32, #tpu.memory_space<vmem>>, vector<8x64xf32>
    tpu.vector_store %arg4[%c0_3, %c0_4], %3 {strides = array<i32>} : memref<8x64xf32, #tpu.memory_space<vmem>>, vector<8x64xf32>,
    return
  }
  func.func @transform_0(%arg0: i32, %arg1: i32) -> (i32, i32) {
    %c0_i32 = arith.constant 0 : i32
    return %arg0, %arg1 : i32, i32
  }
  func.func @transform_1(%arg0: i32, %arg1: i32) -> (i32, i32) {
    %c0_i32 = arith.constant 0 : i32
    %c0_i32_0 = arith.constant 0 : i32
    return %arg0, %c0_i32 : i32, i32
  }
  func.func @transform_2(%arg0: i32, %arg1: i32) -> (i32, i32) {
    %c0_i32 = arith.constant 0 : i32
    return %arg0, %arg1 : i32, i32
  }
}

</mosaic_0001>

<llo_original>
// kernel: tpu_custom_call.1
$region0: #{tpu_custom_call.1}
  #allocation0 [shape = 'u32[]', space=smem, size = 0x4, offset = 0x4, fixed_abs, tag = 'smem constant byte address 0x4 - core index']
  #allocation1 [shape = 'u32[144,128]{1,0:T(1,128)}', space=vmem, size = 0x12000, scoped, tag = 'internal scratch']
  %s0 = inlined_call_operand.hbm [shape: f32[8,64], index: 0, kind: input, shape index: {}]
  %s1 = inlined_call_operand.hbm [shape: f32[8,32], index: 1, kind: input, shape index: {}]
  %s2 = inlined_call_operand.hbm [shape: f32[8,64], index: 2, kind: output, shape index: {}]
  %s3 = sld [smem:[#allocation0]]
  $region26: #{tpu_custom_call.1} parent=0
    _
  %s5 = ssub.s32 1, %s3
  %s6 = scalar_select 0, %s5, %s3
  $region1: #{tpu_custom_call.1} parent=0
    #allocation2 [shape = 'u8[4096]{0}', space=vmem, size = 0x1000, scoped, tag = 'input window, operand 0, single buffered']
    #allocation3 [shape = 's32[1]{0}', space=sflag, size = 0x4, scoped, tag = 'scoped memory for tpu_custom_call.1']
    #allocation4 [shape = 's32[1]{0}', space=sflag, size = 0x4, scoped, tag = 'scoped memory for tpu_custom_call.1']
    #allocation5 [shape = 'u8[4096]{0}', space=vmem, size = 0x1000, scoped, tag = 'input window, operand 1, single buffered']
    #allocation6 [shape = 's32[1]{0}', space=sflag, size = 0x4, scoped, tag = 'scoped memory for tpu_custom_call.1']
    #allocation7 [shape = 'u8[4096]{0}', space=vmem, size = 0x1000, scoped, tag = 'output window, operand 0, single buffered']
    %7 = vsyncpa [#allocation3], 0
    %8 = vsyncpa [#allocation6], 0
    %9 = vsyncpa [#allocation4], 0
    // Predicated region
    $region2: #{tpu_custom_call.1} parent=1 // pred_check
      _
    $region3: #{tpu_custom_call.1} parent=1 // pred_check_branch
      %11 = sbr.rel (0) target = $region5
    $region4: #{tpu_custom_call.1} parent=1 // pred_region
      %s13 = ssub.s32 128, 128
      %14 = vsyncadd [#allocation3], %s13
      %s16 = sshll.u32 [#allocation2], 4
      %s17 = int_to_ptr.vmem [resolvable:$true] %s16
      %19 = dma.hbm_to_vmem [thread:$0]  %s0, 128, %s17, [#allocation3]
    $region5: #{tpu_custom_call.1} parent=1 // pred_fallthru
      _
    // Predicated region
    $region6: #{tpu_custom_call.1} parent=1 // pred_check
      _
    $region7: #{tpu_custom_call.1} parent=1 // pred_check_branch
      %21 = sbr.rel (0) target = $region9
    $region8: #{tpu_custom_call.1} parent=1 // pred_region
      %s23 = ssub.s32 128, 128
      %24 = vsyncadd [#allocation6], %s23
      %s26 = sshll.u32 [#allocation5], 4
      %s27 = int_to_ptr.vmem [resolvable:$true] %s26
      %29 = dma.hbm_to_vmem [thread:$0]  %s1, 128, %s27, [#allocation6]
    $region9: #{tpu_custom_call.1} parent=1 // pred_fallthru
      _
    // Predicated region
    $region10: #{tpu_custom_call.1} parent=1 // pred_check
      _
    $region11: #{tpu_custom_call.1} parent=1 // pred_check_branch
      %31 = sbr.rel (0) target = $region13
    $region12: #{tpu_custom_call.1} parent=1 // pred_region
      %32 = dma.done [#allocation3], 128
    $region13: #{tpu_custom_call.1} parent=1 // pred_fallthru
      _
    // Predicated region
    $region14: #{tpu_custom_call.1} parent=1 // pred_check
      _
    $region15: #{tpu_custom_call.1} parent=1 // pred_check_branch
      %34 = sbr.rel (0) target = $region17
    $region16: #{tpu_custom_call.1} parent=1 // pred_region
      %35 = dma.done [#allocation6], 128
    $region17: #{tpu_custom_call.1} parent=1 // pred_fallthru
      _
    %v36 = vld [vmem:[#allocation5] sm:$0xff]
    %38 = vrot.lane.b32.xlu0 %v36, 32
    %v39 = vpop.permute.xlu0 %38
    %vm41 = vcmask 261120
    %v42 = vsel %vm41, %v36, %v39
    %v43 = vld [vmem:[#allocation2] sm:$0xff]
    %v44 = vadd.f32 %v43, %v42
    %vm45 = vcmask 523264
    %46 = vst.msk [vmem:[#allocation7] sm:$0xff] %vm45, %v44
    // Predicated region
    $region18: #{tpu_custom_call.1} parent=1 // pred_check
      _
    $region19: #{tpu_custom_call.1} parent=1 // pred_check_branch
      %48 = sbr.rel (0) target = $region21
    $region20: #{tpu_custom_call.1} parent=1 // pred_region
      %s50 = ssub.s32 128, 128
      %51 = vsyncadd [#allocation4], %s50
      %s53 = sshll.u32 [#allocation7], 4
      %s54 = int_to_ptr.vmem [resolvable:$true] %s53
      %56 = dma.vmem_to_hbm [thread:$0]  %s54, 128, %s2, [#allocation4]
    $region21: #{tpu_custom_call.1} parent=1 // pred_fallthru
      _
    // Predicated region
    $region22: #{tpu_custom_call.1} parent=1 // pred_check
      _
    $region23: #{tpu_custom_call.1} parent=1 // pred_check_branch
      %58 = sbr.rel (0) target = $region25
    $region24: #{tpu_custom_call.1} parent=1 // pred_region
      %59 = dma.done [#allocation4], 128
    $region25: #{tpu_custom_call.1} parent=1 // pred_fallthru
      _
    %60 = vsyncpa [#allocation3], 1
    %61 = vsyncpa [#allocation6], 1
    %62 = vsyncpa [#allocation4], 1

</llo_original>
